<compile_context>
chip_gen: v5e
topology: v5e:2x2
jax: 0.10.0
libtpu: 0.0.40
codegen_flags: <defaults>
</compile_context>

<pallas_src>
import functools

import jax
import jax.numpy as jnp
from jax.experimental import pallas as pl
from jax.experimental.pallas import tpu as pltpu

_LANE = 128
_NUM_SLICES = 2  # leading "parallel" axis -> both TensorCores on v7x


def _cdiv(a, b):
    return -(-a // b)


def _round_up(x, m):
    return ((x + m - 1) // m) * m


def _combine_loss_kernel(
    pred_ref, true_ref, sq_ref, ab_ref, *,
    tile_rows, lane, inner_steps, total_rows, needs_mask,
):
    """grid = (slice, step). Each slice accumulates its own (1,8,lane) partials."""
    c = pl.program_id(0)  # TensorCore slice (parallel)
    i = pl.program_id(1)  # streaming reduction step (arbitrary)

    @pl.when(i == 0)
    def _():
        sq_ref[...] = jnp.zeros_like(sq_ref)
        ab_ref[...] = jnp.zeros_like(ab_ref)

    diff = pred_ref[...].astype(jnp.float32) - true_ref[...].astype(jnp.float32)

    if needs_mask:
        # UNclamped row offset: partial edge blocks and duplicate (clamped) blocks
        # get num_valid <= tile_rows (possibly <= 0). Mask BEFORE accumulating so
        # unspecified data in the padded DMA window never reaches the sums.
        row_start = (c * inner_steps + i) * tile_rows
        num_valid = total_rows - row_start
        row_idx = jax.lax.broadcasted_iota(jnp.int32, (tile_rows, lane), 0)
        diff = jnp.where(row_idx < num_valid, diff, 0.0)

    # Fold the tile to one (8, lane) partial per term: pure VPU adds across vregs,
    # no XLU cross-lane reduce in the hot loop.
    d3 = diff.reshape(tile_rows // 8, 8, lane)
    sq_ref[0] += (d3 * d3).sum(axis=0)
    ab_ref[0] += jnp.abs(d3).sum(axis=0)


def combine_loss(y_pred, y_true, alpha, *, tile_rows=4096, lane=_LANE):
    """alpha * MSE(y_pred, y_true) + (1 - alpha) * L1(y_pred, y_true)."""
    assert y_pred.shape == y_true.shape
    n_elems = y_pred.size
    itemsize = jnp.dtype(y_pred.dtype).itemsize
    sub = max(8, 32 // itemsize)  # min sublane multiple: f32->8, bf16->16, int8->32
    assert tile_rows % sub == 0

    if n_elems % lane == 0 and (n_elems // lane) >= sub:
        # Common path: no padding, no extra HBM copy -- just a reshape.
        rows = n_elems // lane
        pred2d = y_pred.reshape(rows, lane)
        true2d = y_true.reshape(rows, lane)
    else:
        # TODO(synk): this rare path (element count not a multiple of 128, or tiny
        # inputs) still pads -> one HBM copy of each input.
        rows = _round_up(_cdiv(n_elems, lane), sub)
        pad = rows * lane - n_elems
        pred2d = jnp.pad(y_pred.reshape(-1), (0, pad)).reshape(rows, lane)
        true2d = jnp.pad(y_true.reshape(-1), (0, pad)).reshape(rows, lane)

    tile = min(tile_rows, (rows // sub) * sub)      # multiple of sub, <= rows
    tiles_total = _cdiv(rows, tile)
    inner_steps = _cdiv(tiles_total, _NUM_SLICES)
    # Mask only needed if any block is partial or duplicated (static decision).
    needs_mask = rows != _NUM_SLICES * inner_steps * tile

    def in_map(c, i):
        # Clamp so duplicate trailing steps re-read the last valid tile (their
        # contribution is masked to zero in-kernel); no OOB DMA ever issued.
        return (jnp.minimum(c * inner_steps + i, tiles_total - 1), 0)

    def out_map(c, i):
        return (c, 0, 0)

    kernel = functools.partial(
        _combine_loss_kernel,
        tile_rows=tile,
        lane=lane,
        inner_steps=inner_steps,
        total_rows=rows,
        needs_mask=needs_mask,
    )

    sum_sq, sum_ab = pl.pallas_call(
        kernel,
        out_shape=(
            jax.ShapeDtypeStruct((_NUM_SLICES, 8, lane), jnp.float32),
            jax.ShapeDtypeStruct((_NUM_SLICES, 8, lane), jnp.float32),
        ),
        grid_spec=pltpu.PrefetchScalarGridSpec(
            num_scalar_prefetch=0,
            grid=(_NUM_SLICES, inner_steps),
            in_specs=[
                pl.BlockSpec((tile, lane), in_map),
                pl.BlockSpec((tile, lane), in_map),
            ],
            out_specs=[
                pl.BlockSpec((1, 8, lane), out_map),
                pl.BlockSpec((1, 8, lane), out_map),
            ],
        ),
        compiler_params=pltpu.CompilerParams(
            dimension_semantics=("parallel", "arbitrary"),
            vmem_limit_bytes=40 * 1024 * 1024,
        ),
    )(pred2d, true2d)

    inv_n = jnp.float32(1.0 / float(n_elems))
    mse = jnp.sum(sum_sq) * inv_n
    mae = jnp.sum(sum_ab) * inv_n
    return jnp.float32(alpha) * mse + jnp.float32(1.0 - float(alpha)) * mae


def combine_loss_ref(y_pred, y_true, alpha):
    p = y_pred.astype(jnp.float32)
    t = y_true.astype(jnp.float32)
    mse = jnp.mean((p - t) ** 2)
    mae = jnp.mean(jnp.abs(p - t))
    return alpha * mse + (1.0 - alpha) * mae


if __name__ == "__main__":
    # Small shapes consistent with a segmentation forward: NCHW logits/targets.
    B, C, H, W = 2, 4, 16, 16
    alpha = 0.7

    key = jax.random.PRNGKey(0)
    kp, kt = jax.random.split(key)
    y_pred = jax.random.normal(kp, (B, C, H, W), dtype=jnp.float32)
    y_true = jax.random.normal(kt, (B, C, H, W), dtype=jnp.float32)

    out = jax.block_until_ready(combine_loss(y_pred, y_true, alpha))
    ref = combine_loss_ref(y_pred, y_true, alpha)
    assert jnp.allclose(out, ref, rtol=1e-5, atol=1e-5), (out, ref)

    # Non-tile-aligned / non-128-multiple shape exercises the masked + padded path.
    y_pred2 = jax.random.normal(kp, (3, 5, 17, 13), dtype=jnp.float32)
    y_true2 = jax.random.normal(kt, (3, 5, 17, 13), dtype=jnp.float32)
    out2 = jax.block_until_ready(combine_loss(y_pred2, y_true2, alpha))
    ref2 = combine_loss_ref(y_pred2, y_true2, alpha)
    assert jnp.allclose(out2, ref2, rtol=1e-5, atol=1e-5), (out2, ref2)

    # 128-multiple but not tile-aligned element count (no-pad, masked edge block).
    y_pred3 = jax.random.normal(kp, (2, 3, 8, 80), dtype=jnp.float32)
    y_true3 = jax.random.normal(kt, (2, 3, 8, 80), dtype=jnp.float32)
    out3 = jax.block_until_ready(combine_loss(y_pred3, y_true3, alpha))
    ref3 = combine_loss_ref(y_pred3, y_true3, alpha)
    assert jnp.allclose(out3, ref3, rtol=1e-5, atol=1e-5), (out3, ref3)

    print("KERNEL_OK")
</pallas_src>

<mosaic_0001>
module attributes {stable_mosaic.version = 11 : i64} {
  func.func @_combine_loss_kernel(%arg0: i32, %arg1: i32, %arg2: memref<16x128xf32, #tpu.memory_space<vmem>>, %arg3: memref<16x128xf32, #tpu.memory_space<vmem>>, %arg4: memref<1x8x128xf32, #tpu.memory_space<vmem>>, %arg5: memref<1x8x128xf32, #tpu.memory_space<vmem>>) attributes {dimension_semantics = [#tpu.dimension_semantics<parallel>, #tpu.dimension_semantics<arbitrary>], iteration_bounds = array<i64: 2, 1>, scalar_prefetch = 0 : i64, scratch_operands = 0 : i64, tpu.core_type = #tpu.core_type<tc>, window_params = [{transform_indices = @transform_0, window_bounds = array<i64: 16, 128>}, {transform_indices = @transform_1, window_bounds = array<i64: 16, 128>}, {transform_indices = @transform_2, window_bounds = array<i64: 1, 8, 128>}, {transform_indices = @transform_3, window_bounds = array<i64: 1, 8, 128>}]} {
    %c0_i32 = arith.constant 0 : i32
    %0 = arith.cmpi eq, %arg1, %c0_i32 : i32
    %1 = arith.extui %0 : i1 to i32
    %c0_i32_0 = arith.constant 0 : i32
    %2 = arith.cmpi ne, %1, %c0_i32_0 : i32
    scf.if %2 {
      %cst_19 = arith.constant 0.000000e+00 : f32
      %32 = vector.broadcast %cst_19 : f32 to vector<1x8x128xf32>
      %c0_20 = arith.constant 0 : index
      %c0_21 = arith.constant 0 : index
      %c0_22 = arith.constant 0 : index
      %33 = vector.load %arg4[%c0_20, %c0_21, %c0_22] : memref<1x8x128xf32, #tpu.memory_space<vmem>>, vector<1x8x128xf32>
      tpu.vector_store %arg4[%c0_20, %c0_21, %c0_22], %32 {strides = array<i32>} : memref<1x8x128xf32, #tpu.memory_space<vmem>>, vector<1x8x128xf32>,
      %cst_23 = arith.constant 0.000000e+00 : f32
      %34 = vector.broadcast %cst_23 : f32 to vector<1x8x128xf32>
      %c0_24 = arith.constant 0 : index
      %c0_25 = arith.constant 0 : index
      %c0_26 = arith.constant 0 : index
      %35 = vector.load %arg5[%c0_24, %c0_25, %c0_26] : memref<1x8x128xf32, #tpu.memory_space<vmem>>, vector<1x8x128xf32>
      tpu.vector_store %arg5[%c0_24, %c0_25, %c0_26], %34 {strides = array<i32>} : memref<1x8x128xf32, #tpu.memory_space<vmem>>, vector<1x8x128xf32>,
    } else {
    }
    %c0 = arith.constant 0 : index
    %c0_1 = arith.constant 0 : index
    %3 = vector.load %arg2[%c0, %c0_1] : memref<16x128xf32, #tpu.memory_space<vmem>>, vector<16x128xf32>
    %c0_2 = arith.constant 0 : index
    %c0_3 = arith.constant 0 : index
    %4 = vector.load %arg3[%c0_2, %c0_3] : memref<16x128xf32, #tpu.memory_space<vmem>>, vector<16x128xf32>
    %5 = arith.subf %3, %4 : vector<16x128xf32>
    %c1_i32 = arith.constant 1 : i32
    %6 = arith.muli %arg0, %c1_i32 : i32
    %7 = arith.addi %6, %arg1 : i32
    %c16_i32 = arith.constant 16 : i32
    %8 = arith.muli %7, %c16_i32 : i32
    %c16_i32_4 = arith.constant 16 : i32
    %9 = arith.subi %c16_i32_4, %8 : i32
    %10 = tpu.iota {dimensions = array<i32: 0>} : vector<16x128xi32>
    %11 = vector.broadcast %9 : i32 to vector<16x128xi32>
    %12 = arith.cmpi slt, %10, %11 : vector<16x128xi32>
    %cst = arith.constant 0.000000e+00 : f32
    %13 = vector.broadcast %cst : f32 to vector<16x128xf32>
    %14 = arith.select %12, %5, %13 : vector<16x128xi1>, vector<16x128xf32>
    %15 = vector.shape_cast %14 : vector<16x128xf32> to vector<2x8x128xf32>
    %c0_5 = arith.constant 0 : index
    %c0_6 = arith.constant 0 : index
    %c0_7 = arith.constant 0 : index
    %16 = vector.load %arg4[%c0_5, %c0_6, %c0_7] : memref<1x8x128xf32, #tpu.memory_space<vmem>>, vector<1x8x128xf32>
    %17 = vector.shape_cast %16 : vector<1x8x128xf32> to vector<8x128xf32>
    %18 = arith.mulf %15, %15 : vector<2x8x128xf32>
    %cst_8 = arith.constant dense<0.000000e+00> : vector<8x128xf32>
    %19 = vector.multi_reduction <add>, %18, %cst_8 [0] : vector<2x8x128xf32> to vector<8x128xf32>
    %20 = arith.addf %17, %19 : vector<8x128xf32>
    %c0_9 = arith.constant 0 : index
    %c0_10 = arith.constant 0 : index
    %c0_11 = arith.constant 0 : index
    %21 = vector.load %arg4[%c0_9, %c0_10, %c0_11] : memref<1x8x128xf32, #tpu.memory_space<vmem>>, vector<1x8x128xf32>
    %22 = vector.shape_cast %21 : vector<1x8x128xf32> to vector<8x128xf32>
    %23 = vector.shape_cast %20 : vector<8x128xf32> to vector<1x8x128xf32>
    tpu.vector_store %arg4[%c0_9, %c0_10, %c0_11], %23 {strides = array<i32>} : memref<1x8x128xf32, #tpu.memory_space<vmem>>, vector<1x8x128xf32>,
    %c0_12 = arith.constant 0 : index
    %c0_13 = arith.constant 0 : index
    %c0_14 = arith.constant 0 : index
    %24 = vector.load %arg5[%c0_12, %c0_13, %c0_14] : memref<1x8x128xf32, #tpu.memory_space<vmem>>, vector<1x8x128xf32>
    %25 = vector.shape_cast %24 : vector<1x8x128xf32> to vector<8x128xf32>
    %26 = math.absf %15 : vector<2x8x128xf32>
    %cst_15 = arith.constant dense<0.000000e+00> : vector<8x128xf32>
    %27 = vector.multi_reduction <add>, %26, %cst_15 [0] : vector<2x8x128xf32> to vector<8x128xf32>
    %28 = arith.addf %25, %27 : vector<8x128xf32>
    %c0_16 = arith.constant 0 : index
    %c0_17 = arith.constant 0 : index
    %c0_18 = arith.constant 0 : index
    %29 = vector.load %arg5[%c0_16, %c0_17, %c0_18] : memref<1x8x128xf32, #tpu.memory_space<vmem>>, vector<1x8x128xf32>
    %30 = vector.shape_cast %29 : vector<1x8x128xf32> to vector<8x128xf32>
    %31 = vector.shape_cast %28 : vector<8x128xf32> to vector<1x8x128xf32>
    tpu.vector_store %arg5[%c0_16, %c0_17, %c0_18], %31 {strides = array<i32>} : memref<1x8x128xf32, #tpu.memory_space<vmem>>, vector<1x8x128xf32>,
    return
  }
  func.func @transform_0(%arg0: i32, %arg1: i32) -> (i32, i32) {
    %c1_i32 = arith.constant 1 : i32
    %0 = arith.muli %arg0, %c1_i32 : i32
    %1 = arith.addi %0, %arg1 : i32
    %c0_i32 = arith.constant 0 : i32
    %2 = arith.minsi %1, %c0_i32 : i32
    %c0_i32_0 = arith.constant 0 : i32
    %c0_i32_1 = arith.constant 0 : i32
    return %2, %c0_i32_0 : i32, i32
  }
  func.func @transform_1(%arg0: i32, %arg1: i32) -> (i32, i32) {
    %c1_i32 = arith.constant 1 : i32
    %0 = arith.muli %arg0, %c1_i32 : i32
    %1 = arith.addi %0, %arg1 : i32
    %c0_i32 = arith.constant 0 : i32
    %2 = arith.minsi %1, %c0_i32 : i32
    %c0_i32_0 = arith.constant 0 : i32
    %c0_i32_1 = arith.constant 0 : i32
    return %2, %c0_i32_0 : i32, i32
  }
  func.func @transform_2(%arg0: i32, %arg1: i32) -> (i32, i32, i32) {
    %c0_i32 = arith.constant 0 : i32
    %c0_i32_0 = arith.constant 0 : i32
    %c0_i32_1 = arith.constant 0 : i32
    return %arg0, %c0_i32, %c0_i32_0 : i32, i32, i32
  }
  func.func @transform_3(%arg0: i32, %arg1: i32) -> (i32, i32, i32) {
    %c0_i32 = arith.constant 0 : i32
    %c0_i32_0 = arith.constant 0 : i32
    %c0_i32_1 = arith.constant 0 : i32
    return %arg0, %c0_i32, %c0_i32_0 : i32, i32, i32
  }
}

</mosaic_0001>

<llo_original>
// kernel: tpu_custom_call.1
$region0: #{tpu_custom_call.1}
  #allocation0 [shape = 'u32[]', space=smem, size = 0x4, offset = 0x4, fixed_abs, tag = 'smem constant byte address 0x4 - core index']
  #allocation1 [shape = 'u32[72,128]{1,0:T(1,128)}', space=vmem, size = 0x9000, scoped, tag = 'internal scratch']
  %s0 = inlined_call_operand.hbm [shape: f32[16,128], index: 0, kind: input, shape index: {}]
  %s1 = inlined_call_operand.hbm [shape: f32[16,128], index: 1, kind: input, shape index: {}]
  %s2 = inlined_call_operand.hbm [shape: f32[2,8,128], index: 2, kind: output, shape index: {0}]
  %s3 = inlined_call_operand.hbm [shape: f32[2,8,128], index: 3, kind: output, shape index: {1}]
  %4 = xla_tuple %s2, %s3
  %s5 = sld [smem:[#allocation0]]
  $region61: #{tpu_custom_call.1} parent=0
    _
  %s7 = ssub.s32 1, %s5
  %s8 = scalar_select 0, %s7, %s5
  $region1: #{tpu_custom_call.1} parent=0
    #allocation2 [shape = 'u8[16384]{0}', space=vmem, size = 0x4000, scoped, tag = 'input window, operand 0']
    #allocation3 [shape = 's32[2]{0}', space=sflag, size = 0x8, scoped, tag = 'scoped memory for tpu_custom_call.1']
    #allocation4 [shape = 's32[2]{0}', space=sflag, size = 0x8, scoped, tag = 'scoped memory for tpu_custom_call.1']
    #allocation5 [shape = 'u8[16384]{0}', space=vmem, size = 0x4000, scoped, tag = 'input window, operand 1']
    #allocation6 [shape = 's32[2]{0}', space=sflag, size = 0x8, scoped, tag = 'scoped memory for tpu_custom_call.1']
    #allocation7 [shape = 'u8[8192]{0}', space=vmem, size = 0x2000, scoped, tag = 'output window, operand 0']
    #allocation8 [shape = 'u8[8192]{0}', space=vmem, size = 0x2000, scoped, tag = 'output window, operand 1']
    #allocation9 [shape = 's32[2]{0}', space=sflag, size = 0x8, scoped, tag = 'scoped memory for tpu_custom_call.1']
    %9 = vsyncpa [#allocation3], 0
    %s10 = scalar_lea.sflag [#allocation3], 1
    %11 = vsyncpa %s10, 0
    %12 = vsyncpa [#allocation6], 0
    %s13 = scalar_lea.sflag [#allocation6], 1
    %14 = vsyncpa %s13, 0
    %15 = vsyncpa [#allocation4], 0
    %s16 = scalar_lea.sflag [#allocation4], 1
    %17 = vsyncpa %s16, 0
    %18 = vsyncpa [#allocation9], 0
    %s19 = scalar_lea.sflag [#allocation9], 1
    %20 = vsyncpa %s19, 0
    loop: start=0, step=1, limit=4
    $region2: #{tpu_custom_call.1} parent=1 // loop_pre_header
      _
    $region3: #{tpu_custom_call.1} parent=1 // loop_header
      %s22 = sphi 0, %s26
      %p23 = scmp.ge.s32.totalorder %s22, 4
      %s29 = sphi 0, %s41
      %s30 = sphi 0, %s37
      %s31 = sphi 0, %s29
      %s32 = sphi 0, %s30
      %s33 = sphi 0, %s31
      %s34 = sphi 0, %s32
      %s50 = sphi 0, %s52
      %s53 = sphi 0, %s50
      %s54 = sphi 0, %s53
      %s70 = sphi 0, %s54
      %s82 = sphi 0, %s84
      %s85 = sphi 0, %s82
      %s86 = sphi 0, %s85
      %s102 = sphi 0, %s86
      %s108 = sphi 0, %s110
      %s111 = sphi 0, %s108
      %s112 = sphi 0, %s111
      %s128 = sphi 0, %s112
      %s134 = sphi 0, %s136
      %s137 = sphi 0, %s134
      %s138 = sphi 0, %s137
      %s154 = sphi 0, %s138
    $region4: #{tpu_custom_call.1} parent=1 // loop_header_branch
      %25 = sbr.rel (%p23) target = $region8
    $region5: #{tpu_custom_call.1} parent=1 // loop_body
      %s27 = ssub.s32 %s22, 1
      %s28 = ssub.s32 %s22, 2
      %s35 = sadd.s32 1, %s30
      %p36 = scmp.ge.s32.totalorder %s35, 1
      %s37 = scalar_select %p36, 0, %s35
      %s38 = sadd.s32 1, %s29
      %s39 = scalar_select %p36, %s38, %s29
      %p40 = scmp.ge.s32.totalorder %s39, 2
      %s41 = scalar_select %p40, 0, %s39
      %s42 = sadd.s32 %s29, %s30
      %p43 = scmp.lt.s32.totalorder %s42, 0
      %s44 = scalar_select %p43, %s42, 0
      %s45 = sadd.s32 %s41, %s37
      %p46 = scmp.lt.s32.totalorder %s45, 0
      %s47 = scalar_select %p46, %s45, 0
      %s48 = ssub.s32 %s44, %s47
      %p49 = scmp.eq.s32.totalorder %s48, 0
      %s51 = sadd.s32 %s50, 1
      %s52 = scalar_select %p49, %s50, %s51
      %p55 = pneg %p49
      %p56 = scmp.eq.s32.totalorder %s22, 1
      %p57 = por %p55, %p56
      %p58 = scmp.ne.s32.totalorder %s50, %s53
      %p59 = scmp.eq.s32.totalorder %s22, 0
      %p60 = por %p58, %p59
      %p61 = scmp.ne.s32.totalorder %s50, %s53
      %p62 = scmp.eq.s32.totalorder %s27, 1
      %p63 = por %p61, %p62
      %p64 = scmp.ne.s32.totalorder %s53, %s54
      %p65 = scmp.eq.s32.totalorder %s27, 0
      %p66 = por %p64, %p65
      %p67 = scmp.ne.s32.totalorder %s53, %s54
      %p68 = scmp.eq.s32.totalorder %s28, 1
      %p69 = por %p67, %p68
      %p71 = scmp.ne.s32.totalorder %s54, %s70
      %p72 = scmp.eq.s32.totalorder %s28, 0
      %p73 = por %p71, %p72
      %s74 = sadd.s32 %s29, %s30
      %p75 = scmp.lt.s32.totalorder %s74, 0
      %s76 = scalar_select %p75, %s74, 0
      %s77 = sadd.s32 %s41, %s37
      %p78 = scmp.lt.s32.totalorder %s77, 0
      %s79 = scalar_select %p78, %s77, 0
      %s80 = ssub.s32 %s76, %s79
      %p81 = scmp.eq.s32.totalorder %s80, 0
      %s83 = sadd.s32 %s82, 1
      %s84 = scalar_select %p81, %s82, %s83
      %p87 = pneg %p81
      %p88 = scmp.eq.s32.totalorder %s22, 1
      %p89 = por %p87, %p88
      %p90 = scmp.ne.s32.totalorder %s82, %s85
      %p91 = scmp.eq.s32.totalorder %s22, 0
      %p92 = por %p90, %p91
      %p93 = scmp.ne.s32.totalorder %s82, %s85
      %p94 = scmp.eq.s32.totalorder %s27, 1
      %p95 = por %p93, %p94
      %p96 = scmp.ne.s32.totalorder %s85, %s86
      %p97 = scmp.eq.s32.totalorder %s27, 0
      %p98 = por %p96, %p97
      %p99 = scmp.ne.s32.totalorder %s85, %s86
      %p100 = scmp.eq.s32.totalorder %s28, 1
      %p101 = por %p99, %p100
      %p103 = scmp.ne.s32.totalorder %s86, %s102
      %p104 = scmp.eq.s32.totalorder %s28, 0
      %p105 = por %p103, %p104
      %s106 = ssub.s32 %s29, %s41
      %p107 = scmp.eq.s32.totalorder %s106, 0
      %s109 = sadd.s32 %s108, 1
      %s110 = scalar_select %p107, %s108, %s109
      %p113 = pneg %p107
      %p114 = scmp.eq.s32.totalorder %s22, 1
      %p115 = por %p113, %p114
      %p116 = scmp.ne.s32.totalorder %s108, %s111
      %p117 = scmp.eq.s32.totalorder %s22, 0
      %p118 = por %p116, %p117
      %p119 = scmp.ne.s32.totalorder %s108, %s111
      %p120 = scmp.eq.s32.totalorder %s27, 1
      %p121 = por %p119, %p120
      %p122 = scmp.ne.s32.totalorder %s111, %s112
      %p123 = scmp.eq.s32.totalorder %s27, 0
      %p124 = por %p122, %p123
      %p125 = scmp.ne.s32.totalorder %s111, %s112
      %p126 = scmp.eq.s32.totalorder %s28, 1
      %p127 = por %p125, %p126
      %p129 = scmp.ne.s32.totalorder %s112, %s128
      %p130 = scmp.eq.s32.totalorder %s28, 0
      %p131 = por %p129, %p130
      %s132 = ssub.s32 %s29, %s41
      %p133 = scmp.eq.s32.totalorder %s132, 0
      %s135 = sadd.s32 %s134, 1
      %s136 = scalar_select %p133, %s134, %s135
      %p139 = pneg %p133
      %p140 = scmp.eq.s32.totalorder %s22, 1
      %p141 = por %p139, %p140
      %p142 = scmp.ne.s32.totalorder %s134, %s137
      %p143 = scmp.eq.s32.totalorder %s22, 0
      %p144 = por %p142, %p143
      %p145 = scmp.ne.s32.totalorder %s134, %s137
      %p146 = scmp.eq.s32.totalorder %s27, 1
      %p147 = por %p145, %p146
      %p148 = scmp.ne.s32.totalorder %s137, %s138
      %p149 = scmp.eq.s32.totalorder %s27, 0
      %p150 = por %p148, %p149
      %p151 = scmp.ne.s32.totalorder %s137, %s138
      %p152 = scmp.eq.s32.totalorder %s28, 1
      %p153 = por %p151, %p152
      %p155 = scmp.ne.s32.totalorder %s138, %s154
      %p156 = scmp.eq.s32.totalorder %s28, 0
      %p157 = por %p155, %p156
      %p158 = scmp.le.s32.totalorder 1, %s22
      %p159 = scmp.lt.s32.totalorder %s22, 3
      %p160 = pnand %p158, %p159
      %p161 = pneg %p160
      // Predicated region
      $region9: #{tpu_custom_call.1} parent=5 // pred_check
        _
      $region10: #{tpu_custom_call.1} parent=5 // pred_check_branch
        %163 = sbr.rel (%p160) target = $region12
      $region11: #{tpu_custom_call.1} parent=5 // pred_region
        %s164 = ssub.s32 %s22, 1
      $region12: #{tpu_custom_call.1} parent=5 // pred_fallthru
        _
      %p165 = scmp.lt.s32.totalorder %s22, 2
      // Predicated region
      $region13: #{tpu_custom_call.1} parent=5 // pred_check
        %p166 = pneg %p165
      $region14: #{tpu_custom_call.1} parent=5 // pred_check_branch
        %168 = sbr.rel (%p166) target = $region16
      $region15: #{tpu_custom_call.1} parent=5 // pred_region
        // Predicated region
        $region17: #{tpu_custom_call.1} parent=15 // pred_check
          %p169 = pneg %p60
        $region18: #{tpu_custom_call.1} parent=15 // pred_check_branch
          %171 = sbr.rel (%p169) target = $region20
        $region19: #{tpu_custom_call.1} parent=15 // pred_region
          %s172 = sand.u32 %s50, 1
          %s173 = scalar_lea.sflag [#allocation3], %s172
          %s174 = sand.u32 %s50, 1
          %s175 = smul.addr %s174, 16
          %s176 = scalar_lea.vmem [#allocation2], %s175
          %s177 = sadd.s32 %s29, %s30
          %p178 = scmp.lt.s32.totalorder %s177, 0
          %s179 = scalar_select %p178, %s177, 0
          %s180 = smul.u32 2, %s179
          %182 = vsyncadd %s173, 0
          %s183 = smul.addr %s180, 8
          %s184 = scalar_lea.hbm %s0, %s183
          %s185 = sshll.u32 %s184, 4
          %s186 = int_to_ptr.hbm [resolvable:$true] %s185
          %s187 = sshll.u32 %s176, 4
          %s188 = int_to_ptr.vmem [resolvable:$true] %s187
          %193 = dma.hbm_to_vmem [thread:$0]  %s186, 256, %s188, %s173, 128, 128, 8
        $region20: #{tpu_custom_call.1} parent=15 // pred_fallthru
          _
        // Predicated region
        $region21: #{tpu_custom_call.1} parent=15 // pred_check
          %p194 = pneg %p92
        $region22: #{tpu_custom_call.1} parent=15 // pred_check_branch
          %196 = sbr.rel (%p194) target = $region24
        $region23: #{tpu_custom_call.1} parent=15 // pred_region
          %s197 = sand.u32 %s82, 1
          %s198 = scalar_lea.sflag [#allocation6], %s197
          %s199 = sand.u32 %s82, 1
          %s200 = smul.addr %s199, 16
          %s201 = scalar_lea.vmem [#allocation5], %s200
          %s202 = sadd.s32 %s29, %s30
          %p203 = scmp.lt.s32.totalorder %s202, 0
          %s204 = scalar_select %p203, %s202, 0
          %s205 = smul.u32 2, %s204
          %207 = vsyncadd %s198, 0
          %s208 = smul.addr %s205, 8
          %s209 = scalar_lea.hbm %s1, %s208
          %s210 = sshll.u32 %s209, 4
          %s211 = int_to_ptr.hbm [resolvable:$true] %s210
          %s212 = sshll.u32 %s201, 4
          %s213 = int_to_ptr.vmem [resolvable:$true] %s212
          %218 = dma.hbm_to_vmem [thread:$0]  %s211, 256, %s213, %s198, 128, 128, 8
        $region24: #{tpu_custom_call.1} parent=15 // pred_fallthru
          _
      $region16: #{tpu_custom_call.1} parent=5 // pred_fallthru
        _
      %p219 = scmp.le.s32.totalorder 1, %s22
      %p220 = scmp.lt.s32.totalorder %s22, 3
      %p221 = pnand %p219, %p220
      %p222 = pneg %p221
      // Predicated region
      $region25: #{tpu_custom_call.1} parent=5 // pred_check
        _
      $region26: #{tpu_custom_call.1} parent=5 // pred_check_branch
        %224 = sbr.rel (%p221) target = $region28
      $region27: #{tpu_custom_call.1} parent=5 // pred_region
        %s225 = ssub.s32 %s22, 1
        %s226 = sand.u32 %s53, 1
        %s227 = scalar_lea.sflag [#allocation3], %s226
        %s228 = sand.u32 %s53, 1
        %s229 = smul.addr %s228, 16
        %s230 = scalar_lea.vmem [#allocation2], %s229
        // Predicated region
        $region29: #{tpu_custom_call.1} parent=27 // pred_check
          %p231 = pneg %p66
        $region30: #{tpu_custom_call.1} parent=27 // pred_check_branch
          %233 = sbr.rel (%p231) target = $region32
        $region31: #{tpu_custom_call.1} parent=27 // pred_region
          %235 = dma.done %s227, 256
        $region32: #{tpu_custom_call.1} parent=27 // pred_fallthru
          _
        %s236 = sand.u32 %s85, 1
        %s237 = scalar_lea.sflag [#allocation6], %s236
        %s238 = sand.u32 %s85, 1
        %s239 = smul.addr %s238, 16
        %s240 = scalar_lea.vmem [#allocation5], %s239
        // Predicated region
        $region33: #{tpu_custom_call.1} parent=27 // pred_check
          %p241 = pneg %p98
        $region34: #{tpu_custom_call.1} parent=27 // pred_check_branch
          %243 = sbr.rel (%p241) target = $region36
        $region35: #{tpu_custom_call.1} parent=27 // pred_region
          %245 = dma.done %s237, 256
        $region36: #{tpu_custom_call.1} parent=27 // pred_fallthru
          _
        %s246 = sand.u32 %s53, 1
        %s247 = scalar_lea.sflag [#allocation3], %s246
        %s248 = sand.u32 %s53, 1
        %s249 = smul.addr %s248, 16
        %s250 = scalar_lea.vmem [#allocation2], %s249
        %p251 = pneg %p66
        %p252 = pneg %p63
        %s253 = sand.u32 %s85, 1
        %s254 = scalar_lea.sflag [#allocation6], %s253
        %s255 = sand.u32 %s85, 1
        %s256 = smul.addr %s255, 16
        %s257 = scalar_lea.vmem [#allocation5], %s256
        %p258 = pneg %p98
        %p259 = pneg %p95
        %p260 = pneg %p124
        %p261 = pneg %p121
        %s262 = sand.u32 %s111, 1
        %s263 = scalar_lea.sflag [#allocation4], %s262
        %s264 = sand.u32 %s111, 1
        %s265 = smul.addr %s264, 8
        %s266 = scalar_lea.vmem [#allocation7], %s265
        %p267 = pneg %p150
        %p268 = pneg %p147
        %s269 = sand.u32 %s137, 1
        %s270 = scalar_lea.sflag [#allocation9], %s269
        %s271 = sand.u32 %s137, 1
        %s272 = smul.addr %s271, 8
        %s273 = scalar_lea.vmem [#allocation8], %s272
        %s274 = sadd.s32 %s31, %s32
        %p275 = scmp.lt.s32.totalorder %s274, 0
        %s276 = scalar_select %p275, %s274, 0
        %s277 = smul.u32 2, %s276
        %s278 = sadd.s32 %s31, %s32
        %p279 = scmp.lt.s32.totalorder %s278, 0
        %s280 = scalar_select %p279, %s278, 0
        %s281 = smul.u32 2, %s280
        %p282 = scmp.eq.s32.totalorder %s32, 0
        // Predicated region
        $region37: #{tpu_custom_call.1} parent=27 // pred_check
          %p283 = pneg %p282
        $region38: #{tpu_custom_call.1} parent=27 // pred_check_branch
          %285 = sbr.rel (%p283) target = $region40
        $region39: #{tpu_custom_call.1} parent=27 // pred_region
          %286 = vst [vmem:[%s266] sm:$0xff] 0.0
          %287 = vst [vmem:[%s273] sm:$0xff] 0.0
        $region40: #{tpu_custom_call.1} parent=27 // pred_fallthru
          _
        %v288 = vld [vmem:[%s230] sm:$0xff]
        %v289 = vld [vmem:[%s230 + $0x8] sm:$0xff]
        %v290 = vld [vmem:[%s240] sm:$0xff]
        %v291 = vld [vmem:[%s240 + $0x8] sm:$0xff]
        %v292 = vsub.f32 %v288, %v290
        %v293 = vsub.f32 %v289, %v291
        %s294 = sadd.s32 %s31, %s32
        %s295 = smul.u32 %s294, 16
        %s296 = ssub.s32 16, %s295
        %v297 = vlaneseq
        %v298 = vshrl.u32 %v297, 7
        %v299 = vadd.s32 %v298, 8
        %v300 = vstv %s296
        %vm301 = vcmp.lt.s32.totalorder %v298, %v300
        %vm302 = vcmp.lt.s32.totalorder %v299, %v300
        %v303 = vsel %vm301, %v292, 0.0
        %v304 = vsel %vm302, %v293, 0.0
        %v305 = vld [vmem:[%s266] sm:$0xff]
        %v306 = vmul.f32 %v303, %v303
        %v307 = vmul.f32 %v304, %v304
        %v308 = vadd.f32 %v306, %v307
        %v309 = vadd.f32 %v305, %v308
        %310 = vst [vmem:[%s266] sm:$0xff] %v309
        %v311 = vld [vmem:[%s273] sm:$0xff]
        %v312 = vand.u32 2147483647, %v303
        %v313 = vand.u32 2147483647, %v304
        %v314 = vadd.f32 %v312, %v313
        %v315 = vadd.f32 %v311, %v314
        %316 = vst [vmem:[%s273] sm:$0xff] %v315
        %s317 = sand.u32 %s111, 1
        %s318 = scalar_lea.sflag [#allocation4], %s317
        %s319 = sand.u32 %s111, 1
        %s320 = smul.addr %s319, 8
        %s321 = scalar_lea.vmem [#allocation7], %s320
        %s322 = sand.u32 %s137, 1
        %s323 = scalar_lea.sflag [#allocation9], %s322
        %s324 = sand.u32 %s137, 1
        %s325 = smul.addr %s324, 8
        %s326 = scalar_lea.vmem [#allocation8], %s325
        // Predicated region
        $region41: #{tpu_custom_call.1} parent=27 // pred_check
          %p327 = pneg %p121
        $region42: #{tpu_custom_call.1} parent=27 // pred_check_branch
          %329 = sbr.rel (%p327) target = $region44
        $region43: #{tpu_custom_call.1} parent=27 // pred_region
          %331 = vsyncadd %s318, 0
          %s332 = smul.addr %s31, 8
          %s333 = scalar_lea.hbm %s2, %s332
          %s335 = sshll.u32 %s321, 4
          %s336 = int_to_ptr.vmem [resolvable:$true] %s335
          %s337 = sshll.u32 %s333, 4
          %s338 = int_to_ptr.hbm [resolvable:$true] %s337
          %340 = dma.vmem_to_hbm [thread:$0]  %s336, 128, %s338, %s318
        $region44: #{tpu_custom_call.1} parent=27 // pred_fallthru
          _
        // Predicated region
        $region45: #{tpu_custom_call.1} parent=27 // pred_check
          %p341 = pneg %p147
        $region46: #{tpu_custom_call.1} parent=27 // pred_check_branch
          %343 = sbr.rel (%p341) target = $region48
        $region47: #{tpu_custom_call.1} parent=27 // pred_region
          %345 = vsyncadd %s323, 0
          %s346 = smul.addr %s31, 8
          %s347 = scalar_lea.hbm %s3, %s346
          %s349 = sshll.u32 %s326, 4
          %s350 = int_to_ptr.vmem [resolvable:$true] %s349
          %s351 = sshll.u32 %s347, 4
          %s352 = int_to_ptr.hbm [resolvable:$true] %s351
          %354 = dma.vmem_to_hbm [thread:$0]  %s350, 128, %s352, %s323
        $region48: #{tpu_custom_call.1} parent=27 // pred_fallthru
          _
      $region28: #{tpu_custom_call.1} parent=5 // pred_fallthru
        _
      %p355 = scmp.le.s32.totalorder 2, %s22
      // Predicated region
      $region49: #{tpu_custom_call.1} parent=5 // pred_check
        %p356 = pneg %p355
      $region50: #{tpu_custom_call.1} parent=5 // pred_check_branch
        %358 = sbr.rel (%p356) target = $region52
      $region51: #{tpu_custom_call.1} parent=5 // pred_region
        %s359 = ssub.s32 %s22, 2
        // Predicated region
        $region53: #{tpu_custom_call.1} parent=51 // pred_check
          %p360 = pneg %p127
        $region54: #{tpu_custom_call.1} parent=51 // pred_check_branch
          %362 = sbr.rel (%p360) target = $region56
        $region55: #{tpu_custom_call.1} parent=51 // pred_region
          %s363 = sand.u32 %s112, 1
          %s364 = scalar_lea.sflag [#allocation4], %s363
          %s365 = sand.u32 %s112, 1
          %s366 = smul.addr %s365, 8
          %s367 = scalar_lea.vmem [#allocation7], %s366
          %369 = dma.done %s364, 128
        $region56: #{tpu_custom_call.1} parent=51 // pred_fallthru
          _
        // Predicated region
        $region57: #{tpu_custom_call.1} parent=51 // pred_check
          %p370 = pneg %p153
        $region58: #{tpu_custom_call.1} parent=51 // pred_check_branch
          %372 = sbr.rel (%p370) target = $region60
        $region59: #{tpu_custom_call.1} parent=51 // pred_region
          %s373 = sand.u32 %s138, 1
          %s374 = scalar_lea.sflag [#allocation9], %s373
          %s375 = sand.u32 %s138, 1
          %s376 = smul.addr %s375, 8
          %s377 = scalar_lea.vmem [#allocation8], %s376
          %379 = dma.done %s374, 128
        $region60: #{tpu_custom_call.1} parent=51 // pred_fallthru
          _
      $region52: #{tpu_custom_call.1} parent=5 // pred_fallthru
        _
    $region6: #{tpu_custom_call.1} parent=1 // loop_footer
      %s26 = sadd.s32 1, %s22
    $region7: #{tpu_custom_call.1} parent=1 // loop_footer_branch
      %21 = sbr.rel target = $region3
    $region8: #{tpu_custom_call.1} parent=1 // loop_exit
      _
    %380 = vsyncpa [#allocation3], 1
    %s381 = scalar_lea.sflag [#allocation3], 1
    %382 = vsyncpa %s381, 1
    %383 = vsyncpa [#allocation6], 1
    %s384 = scalar_lea.sflag [#allocation6], 1
    %385 = vsyncpa %s384, 1
    %386 = vsyncpa [#allocation4], 1
    %s387 = scalar_lea.sflag [#allocation4], 1
    %388 = vsyncpa %s387, 1
    %389 = vsyncpa [#allocation9], 1
    %s390 = scalar_lea.sflag [#allocation9], 1
    %391 = vsyncpa %s390, 1

</llo_original>
